<compile_context>
chip_gen: v7x
topology: tpu7x:2x2x1
jax: 0.10.0
libtpu: 0.0.40
codegen_flags: <defaults>
</compile_context>

<pallas_src>
import functools

import jax
import jax.numpy as jnp
from jax.experimental import pallas as pl
from jax.experimental.pallas import tpu as pltpu


def _round_up(x, m):
    return (x + m - 1) // m * m


def _avgpool3x3_flat_kernel(x_ref, o_ref, *, W, HW):
    # x_ref / o_ref: (1, tile_c, H*W) blocks resident in VMEM (auto-pipelined).
    x = x_ref[0].astype(jnp.float32)                              # (tile_c, HW)

    # Flattened spatial position, broadcast over channels.  (1, HW) keeps the
    # iota / masks tiny; jnp.where broadcasts them against the full tile.
    pos = jax.lax.broadcasted_iota(jnp.int32, (1, HW), 1)
    col = pos % W
    zero = jnp.float32(0.0)

    # Horizontal pass (lane axis): centre + left + right, zero outside the row.
    # pltpu.roll is wrap-around; the wrapped edge element is masked to zero.
    left = jnp.where(col == 0, zero, pltpu.roll(x, shift=1, axis=1))
    right = jnp.where(col == W - 1, zero, pltpu.roll(x, shift=HW - 1, axis=1))
    row = x + left + right

    # Vertical pass: shifting the flattened array by a whole row (W) moves data
    # between image rows; mask the first / last row where no neighbour exists.
    up = jnp.where(pos < W, zero, pltpu.roll(row, shift=W, axis=1))
    down = jnp.where(pos >= HW - W, zero, pltpu.roll(row, shift=HW - W, axis=1))
    out = row + up + down

    # PyTorch AvgPool2d default count_include_pad=True -> always divide by 9.
    o_ref[0] = (out * (1.0 / 9.0)).astype(o_ref.dtype)


def _vmem_budget():
    """Per-generation scoped-VMEM limit + the (consistent) tile-sizing budget."""
    try:
        vmem_cap = int(pltpu.get_tpu_info().vmem_capacity_bytes)
    except Exception:
        vmem_cap = 64 * 1024 * 1024          # v7x-safe fallback (smallest VMEM)
    vmem_limit = min(vmem_cap // 2, 64 * 1024 * 1024)   # 32 MiB v7x, 64 MiB v5e/v6e
    budget = (vmem_limit * 3) // 4           # headroom for compiler internal scratch
    return vmem_limit, budget


def _choose_tile_c(N, C, HW, itemsize, budget):
    """Pick the channel tile using the real (sublane,lane)-padded VMEM footprint."""
    sub = max(8, 32 // itemsize)             # sublane tile: 8 f32 / 16 bf16 / 32 int8
    lane_hw = _round_up(HW, 128)             # lane padding of the flattened spatial dim
    # Per grid step (conservative): double-buffered input + output blocks in the
    # input dtype, plus ~5 live f32 temporaries, all at the padded footprint.
    bytes_per_row = lane_hw * (4 * itemsize + 5 * 4)
    max_rows = max(sub, budget // bytes_per_row)

    if C <= max_rows or C <= sub:
        tile_c = C                           # block dim == full dim is always legal
    else:
        tile_c = max(sub, (max_rows // sub) * sub)   # keep (sub,128) rule intact

    # Widen the grid to >= 4 steps when legally possible (v7x megacore + pipeline).
    min_steps = 4
    while (N * ((C + tile_c - 1) // tile_c) < min_steps
           and tile_c % sub == 0 and tile_c // 2 >= sub):
        new_tc = _round_up(tile_c // 2, sub)
        if new_tc >= tile_c:
            break
        tile_c = new_tc
    return tile_c


def avgpool_op(x):
    """AvgPool2d(kernel=3, stride=1, padding=1, count_include_pad=True) on NCHW."""
    N, C, H, W = x.shape
    HW = H * W
    vmem_limit, budget = _vmem_budget()
    tile_c = _choose_tile_c(N, C, HW, x.dtype.itemsize, budget)
    grid_c = pl.cdiv(C, tile_c)              # ragged last block is fine (per-channel op)

    x_flat = x.reshape(N, C, HW)             # free relabel for a contiguous NCHW array
    kernel = functools.partial(_avgpool3x3_flat_kernel, W=W, HW=HW)

    out_flat = pl.pallas_call(
        kernel,
        out_shape=jax.ShapeDtypeStruct((N, C, HW), x.dtype),
        grid_spec=pltpu.PrefetchScalarGridSpec(
            num_scalar_prefetch=0,
            grid=(N, grid_c),
            in_specs=[pl.BlockSpec((1, tile_c, HW), lambda n, c: (n, c, 0))],
            out_specs=pl.BlockSpec((1, tile_c, HW), lambda n, c: (n, c, 0)),
        ),
        compiler_params=pltpu.CompilerParams(
            dimension_semantics=("parallel", "parallel"),
            vmem_limit_bytes=vmem_limit,
        ),
    )(x_flat)
    return out_flat.reshape(N, C, H, W)


def _reference_avgpool(x):
    # Pure-JAX reference with identical semantics, for the sanity check.
    xp = jnp.pad(x, ((0, 0), (0, 0), (1, 1), (1, 1)))
    N, C, H, W = x.shape
    acc = jnp.zeros(x.shape, dtype=jnp.float32)
    for di in range(3):
        for dj in range(3):
            acc = acc + xp[:, :, di:di + H, dj:dj + W].astype(jnp.float32)
    return (acc / 9.0).astype(x.dtype)


if __name__ == "__main__":
    key = jax.random.PRNGKey(0)
    x = jax.random.normal(key, (2, 4, 16, 16), dtype=jnp.float32)

    out = avgpool_op(x)
    out = jax.block_until_ready(out)

    ref = _reference_avgpool(x)
    assert out.shape == (2, 4, 16, 16)
    assert jnp.allclose(out, ref, atol=1e-5, rtol=1e-5)

    print("KERNEL_OK")
</pallas_src>

<mosaic_0001>
module attributes {stable_mosaic.version = 11 : i64} {
  func.func @_avgpool3x3_flat_kernel(%arg0: i32, %arg1: i32, %arg2: memref<1x4x256xf32, #tpu.memory_space<vmem>>, %arg3: memref<1x4x256xf32, #tpu.memory_space<vmem>>) attributes {dimension_semantics = [#tpu.dimension_semantics<parallel>, #tpu.dimension_semantics<parallel>], iteration_bounds = array<i64: 2, 1>, scalar_prefetch = 0 : i64, scratch_operands = 0 : i64, tpu.core_type = #tpu.core_type<tc>, window_params = [{transform_indices = @transform_0, window_bounds = array<i64: 1, 4, 256>}, {transform_indices = @transform_1, window_bounds = array<i64: 1, 4, 256>}]} {
    %c0 = arith.constant 0 : index
    %c0_0 = arith.constant 0 : index
    %c0_1 = arith.constant 0 : index
    %0 = vector.load %arg2[%c0, %c0_0, %c0_1] : memref<1x4x256xf32, #tpu.memory_space<vmem>>, vector<1x4x256xf32>
    %1 = vector.shape_cast %0 : vector<1x4x256xf32> to vector<4x256xf32>
    %2 = tpu.iota {dimensions = array<i32: 1>} : vector<1x256xi32>
    %c16_i32 = arith.constant 16 : i32
    %c0_i32 = arith.constant 0 : i32
    %3 = arith.cmpi eq, %c16_i32, %c0_i32 : i32
    %c1_i32 = arith.constant 1 : i32
    %4 = arith.select %3, %c1_i32, %c16_i32 : i32
    %5 = vector.broadcast %4 : i32 to vector<1x256xi32>
    %6 = arith.remsi %2, %5 : vector<1x256xi32>
    %c0_i32_2 = arith.constant 0 : i32
    %7 = vector.broadcast %c0_i32_2 : i32 to vector<1x256xi32>
    %8 = arith.cmpi ne, %6, %7 : vector<1x256xi32>
    %c0_i32_3 = arith.constant 0 : i32
    %9 = vector.broadcast %c0_i32_3 : i32 to vector<1x256xi32>
    %10 = arith.cmpi slt, %6, %9 : vector<1x256xi32>
    %c0_i32_4 = arith.constant 0 : i32
    %11 = arith.cmpi slt, %4, %c0_i32_4 : i32
    %12 = vector.broadcast %11 : i1 to vector<1x256xi1>
    %13 = vector.broadcast %12 : vector<1x256xi1> to vector<1x256xi1>
    %14 = arith.xori %10, %13 : vector<1x256xi1>
    %15 = arith.andi %14, %8 : vector<1x256xi1>
    %16 = vector.broadcast %4 : i32 to vector<1x256xi32>
    %17 = arith.addi %6, %16 : vector<1x256xi32>
    %18 = arith.select %15, %17, %6 : vector<1x256xi1>, vector<1x256xi32>
    %c0_i32_5 = arith.constant 0 : i32
    %19 = vector.broadcast %c0_i32_5 : i32 to vector<1x256xi32>
    %20 = arith.cmpi eq, %18, %19 : vector<1x256xi32>
    %c1_i32_6 = arith.constant 1 : i32
    %21 = tpu.dynamic_rotate %1 by %c1_i32_6 dim 1 : vector<4x256xf32>, i32 -> vector<4x256xf32>
    %cst = arith.constant 0.000000e+00 : f32
    %22 = vector.shape_cast %20 : vector<1x256xi1> to vector<1x256xi1>
    %23 = vector.broadcast %22 : vector<1x256xi1> to vector<4x256xi1>
    %24 = vector.broadcast %cst : f32 to vector<4x256xf32>
    %25 = arith.select %23, %24, %21 : vector<4x256xi1>, vector<4x256xf32>
    %c15_i32 = arith.constant 15 : i32
    %26 = vector.broadcast %c15_i32 : i32 to vector<1x256xi32>
    %27 = arith.cmpi eq, %18, %26 : vector<1x256xi32>
    %c255_i32 = arith.constant 255 : i32
    %28 = tpu.dynamic_rotate %1 by %c255_i32 dim 1 : vector<4x256xf32>, i32 -> vector<4x256xf32>
    %cst_7 = arith.constant 0.000000e+00 : f32
    %29 = vector.shape_cast %27 : vector<1x256xi1> to vector<1x256xi1>
    %30 = vector.broadcast %29 : vector<1x256xi1> to vector<4x256xi1>
    %31 = vector.broadcast %cst_7 : f32 to vector<4x256xf32>
    %32 = arith.select %30, %31, %28 : vector<4x256xi1>, vector<4x256xf32>
    %33 = arith.addf %1, %25 : vector<4x256xf32>
    %34 = arith.addf %33, %32 : vector<4x256xf32>
    %c16_i32_8 = arith.constant 16 : i32
    %35 = vector.broadcast %c16_i32_8 : i32 to vector<1x256xi32>
    %36 = arith.cmpi slt, %2, %35 : vector<1x256xi32>
    %c16_i32_9 = arith.constant 16 : i32
    %37 = tpu.dynamic_rotate %34 by %c16_i32_9 dim 1 : vector<4x256xf32>, i32 -> vector<4x256xf32>
    %cst_10 = arith.constant 0.000000e+00 : f32
    %38 = vector.shape_cast %36 : vector<1x256xi1> to vector<1x256xi1>
    %39 = vector.broadcast %38 : vector<1x256xi1> to vector<4x256xi1>
    %40 = vector.broadcast %cst_10 : f32 to vector<4x256xf32>
    %41 = arith.select %39, %40, %37 : vector<4x256xi1>, vector<4x256xf32>
    %c240_i32 = arith.constant 240 : i32
    %42 = vector.broadcast %c240_i32 : i32 to vector<1x256xi32>
    %43 = arith.cmpi sge, %2, %42 : vector<1x256xi32>
    %c240_i32_11 = arith.constant 240 : i32
    %44 = tpu.dynamic_rotate %34 by %c240_i32_11 dim 1 : vector<4x256xf32>, i32 -> vector<4x256xf32>
    %cst_12 = arith.constant 0.000000e+00 : f32
    %45 = vector.shape_cast %43 : vector<1x256xi1> to vector<1x256xi1>
    %46 = vector.broadcast %45 : vector<1x256xi1> to vector<4x256xi1>
    %47 = vector.broadcast %cst_12 : f32 to vector<4x256xf32>
    %48 = arith.select %46, %47, %44 : vector<4x256xi1>, vector<4x256xf32>
    %49 = arith.addf %34, %41 : vector<4x256xf32>
    %50 = arith.addf %49, %48 : vector<4x256xf32>
    %cst_13 = arith.constant 0.111111112 : f32
    %51 = vector.broadcast %cst_13 : f32 to vector<4x256xf32>
    %52 = arith.mulf %50, %51 : vector<4x256xf32>
    %c0_14 = arith.constant 0 : index
    %c0_15 = arith.constant 0 : index
    %c0_16 = arith.constant 0 : index
    %53 = vector.load %arg3[%c0_14, %c0_15, %c0_16] : memref<1x4x256xf32, #tpu.memory_space<vmem>>, vector<1x4x256xf32>
    %54 = vector.shape_cast %53 : vector<1x4x256xf32> to vector<4x256xf32>
    %55 = vector.shape_cast %52 : vector<4x256xf32> to vector<1x4x256xf32>
    tpu.vector_store %arg3[%c0_14, %c0_15, %c0_16], %55 {strides = array<i32>} : memref<1x4x256xf32, #tpu.memory_space<vmem>>, vector<1x4x256xf32>,
    return
  }
  func.func @transform_0(%arg0: i32, %arg1: i32) -> (i32, i32, i32) {
    %c0_i32 = arith.constant 0 : i32
    %c0_i32_0 = arith.constant 0 : i32
    return %arg0, %arg1, %c0_i32 : i32, i32, i32
  }
  func.func @transform_1(%arg0: i32, %arg1: i32) -> (i32, i32, i32) {
    %c0_i32 = arith.constant 0 : i32
    %c0_i32_0 = arith.constant 0 : i32
    return %arg0, %arg1, %c0_i32 : i32, i32, i32
  }
}

</mosaic_0001>

<llo_original>
// kernel: tpu_custom_call.1
$region0: #{tpu_custom_call.1}
  #allocation0 [shape = 'u32[]', space=smem, size = 0x4, offset = 0x4, fixed_abs, tag = 'smem constant byte address 0x4 - core index']
  #allocation1 [shape = 'u32[144,128]{1,0:T(1,128)}', space=vmem, size = 0x12000, scoped, tag = 'internal scratch']
  %s0 = inlined_call_operand.hbm [shape: f32[2,4,256], index: 0, kind: input, shape index: {}]
  %s1 = inlined_call_operand.hbm [shape: f32[2,4,256], index: 1, kind: output, shape index: {}]
  %s2 = sld [smem:[#allocation0]]
  $region41: #{tpu_custom_call.1} parent=0
    _
  %s4 = ssub.s32 1, %s2
  %s5 = scalar_select 0, %s4, %s2
  $region1: #{tpu_custom_call.1} parent=0
    #allocation2 [shape = 'u8[8192]{0}', space=vmem, size = 0x2000, scoped, tag = 'input window, operand 0']
    #allocation3 [shape = 's32[2]{0}', space=sflag, size = 0x8, scoped, tag = 'scoped memory for tpu_custom_call.1']
    #allocation4 [shape = 's32[2]{0}', space=sflag, size = 0x8, scoped, tag = 'scoped memory for tpu_custom_call.1']
    #allocation5 [shape = 'u8[8192]{0}', space=vmem, size = 0x2000, scoped, tag = 'output window, operand 0']
    %6 = vsyncpa [#allocation3], 0
    %s7 = scalar_lea.sflag [#allocation3], 1
    %8 = vsyncpa %s7, 0
    %9 = vsyncpa [#allocation4], 0
    %s10 = scalar_lea.sflag [#allocation4], 1
    %11 = vsyncpa %s10, 0
    loop: start=0, step=1, limit=4
    $region2: #{tpu_custom_call.1} parent=1 // loop_pre_header
      _
    $region3: #{tpu_custom_call.1} parent=1 // loop_header
      %s13 = sphi 0, %s17
      %p14 = scmp.ge.s32.totalorder %s13, 4
      %s20 = sphi 0, %s32
      %s21 = sphi 0, %s28
      %s22 = sphi 0, %s20
      %s23 = sphi 0, %s21
      %s24 = sphi 0, %s22
      %s25 = sphi 0, %s23
      %s37 = sphi 0, %s39
      %s40 = sphi 0, %s37
      %s41 = sphi 0, %s40
      %s57 = sphi 0, %s41
      %s65 = sphi 0, %s67
      %s68 = sphi 0, %s65
      %s69 = sphi 0, %s68
      %s85 = sphi 0, %s69
    $region4: #{tpu_custom_call.1} parent=1 // loop_header_branch
      %16 = sbr.rel (%p14) target = $region8
    $region5: #{tpu_custom_call.1} parent=1 // loop_body
      %s18 = ssub.s32 %s13, 1
      %s19 = ssub.s32 %s13, 2
      %s26 = sadd.s32 1, %s21
      %p27 = scmp.ge.s32.totalorder %s26, 1
      %s28 = scalar_select %p27, 0, %s26
      %s29 = sadd.s32 1, %s20
      %s30 = scalar_select %p27, %s29, %s20
      %p31 = scmp.ge.s32.totalorder %s30, 2
      %s32 = scalar_select %p31, 0, %s30
      %s33 = ssub.s32 %s20, %s32
      %s34 = ssub.s32 %s21, %s28
      %s35 = sor.u32 %s33, %s34
      %p36 = scmp.eq.s32.totalorder %s35, 0
      %s38 = sadd.s32 %s37, 1
      %s39 = scalar_select %p36, %s37, %s38
      %p42 = pneg %p36
      %p43 = scmp.eq.s32.totalorder %s13, 1
      %p44 = por %p42, %p43
      %p45 = scmp.ne.s32.totalorder %s37, %s40
      %p46 = scmp.eq.s32.totalorder %s13, 0
      %p47 = por %p45, %p46
      %p48 = scmp.ne.s32.totalorder %s37, %s40
      %p49 = scmp.eq.s32.totalorder %s18, 1
      %p50 = por %p48, %p49
      %p51 = scmp.ne.s32.totalorder %s40, %s41
      %p52 = scmp.eq.s32.totalorder %s18, 0
      %p53 = por %p51, %p52
      %p54 = scmp.ne.s32.totalorder %s40, %s41
      %p55 = scmp.eq.s32.totalorder %s19, 1
      %p56 = por %p54, %p55
      %p58 = scmp.ne.s32.totalorder %s41, %s57
      %p59 = scmp.eq.s32.totalorder %s19, 0
      %p60 = por %p58, %p59
      %s61 = ssub.s32 %s20, %s32
      %s62 = ssub.s32 %s21, %s28
      %s63 = sor.u32 %s61, %s62
      %p64 = scmp.eq.s32.totalorder %s63, 0
      %s66 = sadd.s32 %s65, 1
      %s67 = scalar_select %p64, %s65, %s66
      %p70 = pneg %p64
      %p71 = scmp.eq.s32.totalorder %s13, 1
      %p72 = por %p70, %p71
      %p73 = scmp.ne.s32.totalorder %s65, %s68
      %p74 = scmp.eq.s32.totalorder %s13, 0
      %p75 = por %p73, %p74
      %p76 = scmp.ne.s32.totalorder %s65, %s68
      %p77 = scmp.eq.s32.totalorder %s18, 1
      %p78 = por %p76, %p77
      %p79 = scmp.ne.s32.totalorder %s68, %s69
      %p80 = scmp.eq.s32.totalorder %s18, 0
      %p81 = por %p79, %p80
      %p82 = scmp.ne.s32.totalorder %s68, %s69
      %p83 = scmp.eq.s32.totalorder %s19, 1
      %p84 = por %p82, %p83
      %p86 = scmp.ne.s32.totalorder %s69, %s85
      %p87 = scmp.eq.s32.totalorder %s19, 0
      %p88 = por %p86, %p87
      %p89 = scmp.le.s32.totalorder 1, %s13
      %p90 = scmp.lt.s32.totalorder %s13, 3
      %p91 = pnand %p89, %p90
      %p92 = pneg %p91
      // Predicated region
      $region9: #{tpu_custom_call.1} parent=5 // pred_check
        _
      $region10: #{tpu_custom_call.1} parent=5 // pred_check_branch
        %94 = sbr.rel (%p91) target = $region12
      $region11: #{tpu_custom_call.1} parent=5 // pred_region
        %s95 = ssub.s32 %s13, 1
      $region12: #{tpu_custom_call.1} parent=5 // pred_fallthru
        _
      %p96 = scmp.lt.s32.totalorder %s13, 2
      // Predicated region
      $region13: #{tpu_custom_call.1} parent=5 // pred_check
        %p97 = pneg %p96
      $region14: #{tpu_custom_call.1} parent=5 // pred_check_branch
        %99 = sbr.rel (%p97) target = $region16
      $region15: #{tpu_custom_call.1} parent=5 // pred_region
        // Predicated region
        $region17: #{tpu_custom_call.1} parent=15 // pred_check
          %p100 = pneg %p47
        $region18: #{tpu_custom_call.1} parent=15 // pred_check_branch
          %102 = sbr.rel (%p100) target = $region20
        $region19: #{tpu_custom_call.1} parent=15 // pred_region
          %s103 = sand.u32 %s37, 1
          %s104 = scalar_lea.sflag [#allocation3], %s103
          %s105 = sand.u32 %s37, 1
          %s106 = smul.addr %s105, 8
          %s107 = scalar_lea.vmem [#allocation2], %s106
          %s109 = ssub.s32 128, 128
          %110 = vsyncadd %s104, %s109
          %s111 = smul.addr %s21, 2
          %s112 = smul.addr %s20, 2
          %s113 = sadd.s32 %s111, %s112
          %s114 = smul.addr %s113, 64
          %s115 = scalar_lea.hbm %s0, %s114
          %s117 = sshll.u32 %s107, 4
          %s118 = int_to_ptr.vmem [resolvable:$true] %s117
          %120 = dma.hbm_to_vmem [thread:$0]  %s115, 128, %s118, %s104
        $region20: #{tpu_custom_call.1} parent=15 // pred_fallthru
          _
      $region16: #{tpu_custom_call.1} parent=5 // pred_fallthru
        _
      %p121 = scmp.le.s32.totalorder 1, %s13
      %p122 = scmp.lt.s32.totalorder %s13, 3
      %p123 = pnand %p121, %p122
      %p124 = pneg %p123
      // Predicated region
      $region21: #{tpu_custom_call.1} parent=5 // pred_check
        _
      $region22: #{tpu_custom_call.1} parent=5 // pred_check_branch
        %126 = sbr.rel (%p123) target = $region24
      $region23: #{tpu_custom_call.1} parent=5 // pred_region
        %s127 = ssub.s32 %s13, 1
        %s128 = sand.u32 %s40, 1
        %s129 = scalar_lea.sflag [#allocation3], %s128
        %s130 = sand.u32 %s40, 1
        %s131 = smul.addr %s130, 8
        %s132 = scalar_lea.vmem [#allocation2], %s131
        // Predicated region
        $region25: #{tpu_custom_call.1} parent=23 // pred_check
          %p133 = pneg %p53
        $region26: #{tpu_custom_call.1} parent=23 // pred_check_branch
          %135 = sbr.rel (%p133) target = $region28
        $region27: #{tpu_custom_call.1} parent=23 // pred_region
          %136 = dma.done %s129, 128
        $region28: #{tpu_custom_call.1} parent=23 // pred_fallthru
          _
        %s137 = sand.u32 %s40, 1
        %s138 = scalar_lea.sflag [#allocation3], %s137
        %s139 = sand.u32 %s40, 1
        %s140 = smul.addr %s139, 8
        %s141 = scalar_lea.vmem [#allocation2], %s140
        %p142 = pneg %p53
        %p143 = pneg %p50
        %p144 = pneg %p81
        %p145 = pneg %p78
        %s146 = sand.u32 %s68, 1
        %s147 = scalar_lea.sflag [#allocation4], %s146
        %s148 = sand.u32 %s68, 1
        %s149 = smul.addr %s148, 8
        %s150 = scalar_lea.vmem [#allocation5], %s149
        %v151 = vld [vmem:[%s132] sm:$0xff]
        %v152 = vlaneseq
        %v153 = vand.u32 %v152, 127
        %v154 = vadd.s32 %v153, 128
        %vm155 = vcmp.lt.s32.totalorder %v153, 0
        %v156 = vsub.s32 0, %v153
        %v157 = vsel %vm155, %v156, %v153
        %v158 = vshrl.u32 %v157, 4
        %v159 = vand.u32 %v157, 15
        %v160 = vsub.s32 0, %v159
        %v161 = vsel %vm155, %v160, %v159
        %vm162 = vcmp.lt.s32.totalorder %v154, 0
        %v163 = vsub.s32 0, %v154
        %v164 = vsel %vm162, %v163, %v154
        %v165 = vshrl.u32 %v164, 4
        %v166 = vand.u32 %v164, 15
        %v167 = vsub.s32 0, %v166
        %v168 = vsel %vm162, %v167, %v166
        %vm169 = vcmp.ne.s32.totalorder %v161, 0
        %vm170 = vcmp.ne.s32.totalorder %v168, 0
        %vm171 = vcmp.lt.s32.totalorder %v161, 0
        %vm172 = vcmp.lt.s32.totalorder %v168, 0
        %vm173 = vmand %vm171, %vm169
        %vm174 = vmand %vm172, %vm170
        %v175 = vadd.s32 %v161, 16
        %v176 = vadd.s32 %v168, 16
        %v177 = vsel %vm173, %v175, %v161
        %v178 = vsel %vm174, %v176, %v168
        %vm179 = vcmp.eq.s32.totalorder %v177, 0
        %vm180 = vcmp.eq.s32.totalorder %v178, 0
        %v182 = vcombine.high %v151, %v151
        %184 = vrot.lane.b32.xlu0 %v151, 1
        %v185 = vpop.permute.xlu0 %184
        %186 = vrot.lane.b32.xlu0 %v182, 1
        %v187 = vpop.permute.xlu0 %186
        %vm188 = vcmp.lt.s32.totalorder %v153, 1
        %v189 = vsel %vm188, %v185, %v187
        %v190 = vsel %vm188, %v187, %v185
        %v191 = vsel %vm179, 1, 0
        %v192 = vsel %vm180, 1, 0
        %vm193 = vcmp.eq.s32.totalorder %v191, 1
        %vm194 = vcmp.eq.s32.totalorder %v192, 1
        %v195 = vsel %vm193, 0.0, %v190
        %v196 = vsel %vm194, 0.0, %v189
        %vm197 = vcmp.eq.s32.totalorder %v177, 15
        %vm198 = vcmp.eq.s32.totalorder %v178, 15
        %199 = vrot.lane.b32.xlu0 %v151, 127
        %v200 = vpop.permute.xlu0 %199
        %201 = vrot.lane.b32.xlu0 %v182, 127
        %v202 = vpop.permute.xlu0 %201
        %vm203 = vcmp.lt.s32.totalorder %v153, 127
        %v204 = vsel %vm203, %v200, %v202
        %v205 = vsel %vm203, %v202, %v200
        %v206 = vsel %vm197, 1, 0
        %v207 = vsel %vm198, 1, 0
        %vm208 = vcmp.eq.s32.totalorder %v206, 1
        %vm209 = vcmp.eq.s32.totalorder %v207, 1
        %v210 = vsel %vm208, 0.0, %v204
        %v211 = vsel %vm209, 0.0, %v205
        %v214 = vcombine.low %v195, %v196
        %v216 = vadd.f32 %v151, %v214
        %v219 = vcombine.low %v210, %v211
        %v221 = vadd.f32 %v216, %v219
        %vm222 = vcmp.lt.s32.totalorder %v153, 16
        %vm223 = vcmp.lt.s32.totalorder %v154, 16
        %v225 = vcombine.high %v221, %v221
        %227 = vrot.lane.b32.xlu0 %v221, 16
        %v228 = vpop.permute.xlu0 %227
        %229 = vrot.lane.b32.xlu0 %v225, 16
        %v230 = vpop.permute.xlu0 %229
        %v231 = vsel %vm222, %v228, %v230
        %v232 = vsel %vm222, %v230, %v228
        %v233 = vsel %vm222, 1, 0
        %v234 = vsel %vm223, 1, 0
        %vm235 = vcmp.eq.s32.totalorder %v233, 1
        %vm236 = vcmp.eq.s32.totalorder %v234, 1
        %v237 = vsel %vm235, 0.0, %v232
        %v238 = vsel %vm236, 0.0, %v231
        %vm239 = vcmp.ge.s32.totalorder %v153, 240
        %vm240 = vcmp.ge.s32.totalorder %v154, 240
        %241 = vrot.lane.b32.xlu0 %v221, 112
        %v242 = vpop.permute.xlu0 %241
        %243 = vrot.lane.b32.xlu0 %v225, 112
        %v244 = vpop.permute.xlu0 %243
        %vm245 = vcmp.lt.s32.totalorder %v153, 112
        %v246 = vsel %vm245, %v242, %v244
        %v247 = vsel %vm245, %v244, %v242
        %v248 = vsel %vm239, 1, 0
        %v249 = vsel %vm240, 1, 0
        %vm250 = vcmp.eq.s32.totalorder %v248, 1
        %vm251 = vcmp.eq.s32.totalorder %v249, 1
        %v252 = vsel %vm250, 0.0, %v246
        %v253 = vsel %vm251, 0.0, %v247
        %v256 = vcombine.low %v237, %v238
        %v258 = vadd.f32 %v221, %v256
        %v261 = vcombine.low %v252, %v253
        %v263 = vadd.f32 %v258, %v261
        %v264 = vmul.f32 %v263, 0.11111111
        %265 = vst [vmem:[%s150] sm:$0xff] %v264
        %s266 = sand.u32 %s68, 1
        %s267 = scalar_lea.sflag [#allocation4], %s266
        %s268 = sand.u32 %s68, 1
        %s269 = smul.addr %s268, 8
        %s270 = scalar_lea.vmem [#allocation5], %s269
        // Predicated region
        $region29: #{tpu_custom_call.1} parent=23 // pred_check
          %p271 = pneg %p78
        $region30: #{tpu_custom_call.1} parent=23 // pred_check_branch
          %273 = sbr.rel (%p271) target = $region32
        $region31: #{tpu_custom_call.1} parent=23 // pred_region
          %s275 = ssub.s32 128, 128
          %276 = vsyncadd %s267, %s275
          %s277 = smul.addr %s23, 2
          %s278 = smul.addr %s22, 2
          %s279 = sadd.s32 %s277, %s278
          %s280 = smul.addr %s279, 64
          %s281 = scalar_lea.hbm %s1, %s280
          %s283 = sshll.u32 %s270, 4
          %s284 = int_to_ptr.vmem [resolvable:$true] %s283
          %286 = dma.vmem_to_hbm [thread:$0]  %s284, 128, %s281, %s267
        $region32: #{tpu_custom_call.1} parent=23 // pred_fallthru
          _
      $region24: #{tpu_custom_call.1} parent=5 // pred_fallthru
        _
      %p287 = scmp.le.s32.totalorder 2, %s13
      // Predicated region
      $region33: #{tpu_custom_call.1} parent=5 // pred_check
        %p288 = pneg %p287
      $region34: #{tpu_custom_call.1} parent=5 // pred_check_branch
        %290 = sbr.rel (%p288) target = $region36
      $region35: #{tpu_custom_call.1} parent=5 // pred_region
        %s291 = ssub.s32 %s13, 2
        // Predicated region
        $region37: #{tpu_custom_call.1} parent=35 // pred_check
          %p292 = pneg %p84
        $region38: #{tpu_custom_call.1} parent=35 // pred_check_branch
          %294 = sbr.rel (%p292) target = $region40
        $region39: #{tpu_custom_call.1} parent=35 // pred_region
          %s295 = sand.u32 %s69, 1
          %s296 = scalar_lea.sflag [#allocation4], %s295
          %s297 = sand.u32 %s69, 1
          %s298 = smul.addr %s297, 8
          %s299 = scalar_lea.vmem [#allocation5], %s298
          %300 = dma.done %s296, 128
        $region40: #{tpu_custom_call.1} parent=35 // pred_fallthru
          _
      $region36: #{tpu_custom_call.1} parent=5 // pred_fallthru
        _
    $region6: #{tpu_custom_call.1} parent=1 // loop_footer
      %s17 = sadd.s32 1, %s13
    $region7: #{tpu_custom_call.1} parent=1 // loop_footer_branch
      %12 = sbr.rel target = $region3
    $region8: #{tpu_custom_call.1} parent=1 // loop_exit
      _
    %301 = vsyncpa [#allocation3], 1
    %s302 = scalar_lea.sflag [#allocation3], 1
    %303 = vsyncpa %s302, 1
    %304 = vsyncpa [#allocation4], 1
    %s305 = scalar_lea.sflag [#allocation4], 1
    %306 = vsyncpa %s305, 1

</llo_original>
